<compile_context>
chip_gen: v6e
topology: v6e:2x2x1
jax: 0.10.0
libtpu: 0.0.40
codegen_flags: <defaults>
</compile_context>

<pallas_src>
import functools
import math

import jax
import jax.numpy as jnp
from jax.experimental import pallas as pl
from jax.experimental.pallas import tpu as pltpu


_INV_SQRT2 = 0.7071067811865476


def _round_up(x, m):
    return ((x + m - 1) // m) * m


def _cdiv(a, b):
    return -(-a // b)


def _vmem_capacity_bytes():
    # Generation-aware capacity (v5e/v6e: 128 MiB, v7x: 64 MiB per TensorCore).
    try:
        cap = int(pltpu.get_tpu_info().vmem_capacity_bytes)
        if cap > 0:
            return cap
    except Exception:
        pass
    return 64 * 1024 * 1024  # conservative fallback that fits every generation


def _vmem_need(tm, tk, in_pad, h_pad, x_item, w_item, out_item, w_single_buffer):
    """Estimated VMEM footprint of one pipelined step (bytes)."""
    k_steps = _cdiv(in_pad, tk)
    w_bufs = 1 if (k_steps == 1 and w_single_buffer) else 2
    return (w_bufs * tk * h_pad * w_item          # weight tile(s)
            + 2 * tm * tk * x_item                # x tile, double-buffered
            + 2 * tm * h_pad * out_item           # out tile, double-buffered
            + 4 * tm * h_pad * 4                  # f32 acc + ~3 epilogue temps
            + 8 * h_pad * 4                       # packed bias/gamma/beta
            + (2 << 20))                          # misc compiler scratch slack


def _choose_tiles(M, in_pad, h_pad, x_item, w_item, out_item, budget,
                  w_single_buffer, row_tile=None, k_tile=None):
    pack = 8 if x_item >= 4 else 16               # sublane pack (f32 / 16-bit)
    target_tm = 512 if x_item >= 4 else 1024
    if row_tile is not None:
        tm = max(pack, _round_up(row_tile, pack))
    else:
        # Keep >= 2 row steps so the "parallel" row axis can shard across the
        # two TensorCores of a v7x chip (harmless on single-TC v5e/v6e).
        tm = min(target_tm, _round_up(max(_cdiv(M, 2), 1), pack))
        tm = max(pack, (tm // pack) * pack)
    if k_tile is not None:
        tk = min(_round_up(k_tile, 128), in_pad)
    else:
        tk = in_pad
    min_tk = min(in_pad, 512)
    while (_vmem_need(tm, tk, in_pad, h_pad, x_item, w_item, out_item,
                      w_single_buffer) > budget
           and (tk > min_tk or tm > pack)):
        if tk > min_tk:                           # prefer splitting K first
            tk = max(min_tk, _round_up(tk // 2, 128))
        else:
            tm = max(pack, ((tm // 2) // pack) * pack)
    return tm, tk


def _make_kernel(eps, hidden, pad_cols, k_split):
    """Builds the fused dense+gelu+LayerNorm kernel body."""

    def _epilogue(h, p_ref, o_ref):
        # h: (tm, h_pad) f32.  Packed params: row0=bias, row1=gamma, row2=beta.
        h = h + p_ref[0:1, :]
        # Exact erf gelu (matches BERT ACT2FN["gelu"]); multiply, no divide.
        h = h * (0.5 + 0.5 * jax.lax.erf(h * _INV_SQRT2))
        # LayerNorm over the true hidden dim (two-pass variance; padded
        # hidden columns are exactly zero so they add pad_cols * mean^2 to
        # the squared-deviation sum, which we remove exactly).
        inv_n = 1.0 / float(hidden)
        mean = jnp.sum(h, axis=-1, keepdims=True) * inv_n
        d = h - mean
        s2 = jnp.sum(d * d, axis=-1, keepdims=True)
        if pad_cols > 0:
            s2 = s2 - float(pad_cols) * (mean * mean)
        var = jnp.maximum(s2 * inv_n, 0.0)
        y = d * jax.lax.rsqrt(var + eps)
        y = y * p_ref[1:2, :] + p_ref[2:3, :]
        o_ref[...] = y.astype(o_ref.dtype)

    if not k_split:
        # Whole contraction resident: no accumulator round-trip through VMEM.
        def kernel(x_ref, w_ref, p_ref, o_ref):
            h = jnp.dot(x_ref[...], w_ref[...],
                        preferred_element_type=jnp.float32)
            _epilogue(h, p_ref, o_ref)
        return kernel

    def kernel(x_ref, w_ref, p_ref, o_ref, acc_ref):
        k = pl.program_id(1)

        @pl.when(k == 0)
        def _():
            acc_ref[...] = jnp.zeros_like(acc_ref)

        acc_ref[...] += jnp.dot(x_ref[...], w_ref[...],
                                preferred_element_type=jnp.float32)

        @pl.when(k == pl.num_programs(1) - 1)
        def _():
            _epilogue(acc_ref[...], p_ref, o_ref)

    return kernel


def bert_head_transform(x, w, b, gamma, beta, *, eps=1e-12,
                        row_tile=None, k_tile=None):
    """x: [B, S, input_size]; w: [input_size, hidden]; b/gamma/beta: [hidden]."""
    B, S, in_size = x.shape
    assert w.shape[0] == in_size
    hidden = w.shape[1]
    M = B * S

    x_item = jnp.dtype(x.dtype).itemsize
    w_item = jnp.dtype(w.dtype).itemsize
    out_dtype = x.dtype
    out_item = jnp.dtype(out_dtype).itemsize

    # Lane-dense padding of contraction / hidden dims.  Zero padding
    # contributes nothing to the matmul or the LN statistics.
    in_pad = _round_up(in_size, 128)
    h_pad = _round_up(hidden, 128)
    # TODO(synk): on v6e/v7x, consider 256-padding for dims that are 128- but
    # not 256-aligned (2x256x256 MXU); standard BERT dims are already aligned.

    cap = _vmem_capacity_bytes()
    budget = int(0.60 * cap)

    x2 = x.reshape(M, in_size)

    # Packed (bias, gamma, beta) as one f32 (8, h_pad) operand (rows 0..2).
    params = jnp.zeros((8, h_pad), jnp.float32)
    params = params.at[0, :hidden].set(b.astype(jnp.float32))
    params = params.at[1, :hidden].set(gamma.astype(jnp.float32))
    params = params.at[2, :hidden].set(beta.astype(jnp.float32))

    def _run(single_buffer_consts):
        tm, tk = _choose_tiles(M, in_pad, h_pad, x_item, w_item, out_item,
                               budget, single_buffer_consts, row_tile, k_tile)
        k_steps = _cdiv(in_pad, tk)
        in_pad2 = k_steps * tk                    # zero-pad K to a tile multiple

        xp = x2 if in_pad2 == in_size else jnp.pad(
            x2, ((0, 0), (0, in_pad2 - in_size)))
        wp = w if (in_pad2 == in_size and h_pad == hidden) else jnp.pad(
            w, ((0, in_pad2 - in_size), (0, h_pad - hidden)))

        kernel = _make_kernel(eps=float(eps), hidden=hidden,
                              pad_cols=h_pad - hidden, k_split=(k_steps > 1))

        # Generous compile-time VMEM cap, never above physical capacity.
        need = _vmem_need(tm, tk, in_pad2, h_pad, x_item, w_item, out_item,
                          False)
        vmem_limit = int(min(max(need + (4 << 20), 32 << 20), cap))

        const_kw = ({"pipeline_mode": pl.Buffered(1)}
                    if single_buffer_consts else {})

        if k_steps == 1:
            grid = (pl.cdiv(M, tm),)
            in_specs = [
                pl.BlockSpec((tm, tk), lambda i: (i, 0)),               # x rows
                pl.BlockSpec((tk, h_pad), lambda i: (0, 0), **const_kw),  # weight
                pl.BlockSpec((8, h_pad), lambda i: (0, 0), **const_kw),   # params
            ]
            out_specs = pl.BlockSpec((tm, h_pad), lambda i: (i, 0))
            scratch = []
            dims = ("parallel",)
        else:
            grid = (pl.cdiv(M, tm), k_steps)
            in_specs = [
                pl.BlockSpec((tm, tk), lambda i, k: (i, k)),              # x
                pl.BlockSpec((tk, h_pad), lambda i, k: (k, 0)),           # weight
                pl.BlockSpec((8, h_pad), lambda i, k: (0, 0), **const_kw),  # params
            ]
            out_specs = pl.BlockSpec((tm, h_pad), lambda i, k: (i, 0))
            scratch = [pltpu.VMEM((tm, h_pad), jnp.float32)]
            dims = ("parallel", "arbitrary")

        return pl.pallas_call(
            kernel,
            out_shape=jax.ShapeDtypeStruct((M, h_pad), out_dtype),
            grid_spec=pltpu.PrefetchScalarGridSpec(
                num_scalar_prefetch=0,
                grid=grid,
                in_specs=in_specs,
                out_specs=out_specs,
                scratch_shapes=scratch),
            compiler_params=pltpu.CompilerParams(
                dimension_semantics=dims,
                vmem_limit_bytes=vmem_limit),
        )(xp, wp, params)

    try:
        out = _run(True)
    except Exception:
        # pl.Buffered(1) (single-buffered constant operands) not supported on
        # this JAX version -> fall back to default double buffering.
        out = _run(False)

    return out[:, :hidden].reshape(B, S, hidden)


def _reference(x, w, b, gamma, beta, eps=1e-12):
    h = jnp.einsum("bsi,ih->bsh", x, w) + b
    h = 0.5 * h * (1.0 + jax.lax.erf(h / jnp.sqrt(2.0)))
    mean = jnp.mean(h, axis=-1, keepdims=True)
    var = jnp.mean((h - mean) ** 2, axis=-1, keepdims=True)
    h = (h - mean) / jnp.sqrt(var + eps)
    return h * gamma + beta


if __name__ == "__main__":
    # Small shapes implied by the module: hidden_states [batch, seq, input_size]
    batch, seq, input_size, hidden = 2, 8, 32, 32

    key = jax.random.PRNGKey(0)
    k_x, k_w, k_b = jax.random.split(key, 3)

    x = jax.random.normal(k_x, (batch, seq, input_size), dtype=jnp.float32)
    # nn.Linear-like init, stored as (in, hidden) so the kernel computes
    # x @ W directly (== PyTorch x @ weight.T).
    bound = 1.0 / math.sqrt(input_size)
    w = jax.random.uniform(k_w, (input_size, hidden), jnp.float32, -bound, bound)
    b = jax.random.uniform(k_b, (hidden,), jnp.float32, -bound, bound)
    gamma = jnp.ones((hidden,), jnp.float32)   # BertLayerNorm weight init = 1
    beta = jnp.zeros((hidden,), jnp.float32)   # BertLayerNorm bias init = 0

    out = bert_head_transform(x, w, b, gamma, beta, eps=1e-12)
    out = jax.block_until_ready(out)

    ref = _reference(x, w, b, gamma, beta, eps=1e-12)
    assert out.shape == (batch, seq, hidden)
    assert jnp.allclose(out, ref, atol=2e-5, rtol=2e-5), "mismatch vs reference"

    print("KERNEL_OK")
</pallas_src>

<mosaic_0001>
module attributes {stable_mosaic.version = 11 : i64} {
  func.func @kernel(%arg0: i32, %arg1: memref<8x128xf32, #tpu.memory_space<vmem>>, %arg2: memref<128x128xf32, #tpu.memory_space<vmem>>, %arg3: memref<8x128xf32, #tpu.memory_space<vmem>>, %arg4: memref<8x128xf32, #tpu.memory_space<vmem>>) attributes {dimension_semantics = [#tpu.dimension_semantics<parallel>], iteration_bounds = array<i64: 2>, scalar_prefetch = 0 : i64, scratch_operands = 0 : i64, tpu.core_type = #tpu.core_type<tc>, window_params = [{transform_indices = @transform_0, window_bounds = array<i64: 8, 128>}, {pipeline_mode = #tpu.pipeline_mode<synchronous>, transform_indices = @transform_1, window_bounds = array<i64: 128, 128>}, {pipeline_mode = #tpu.pipeline_mode<synchronous>, transform_indices = @transform_2, window_bounds = array<i64: 8, 128>}, {transform_indices = @transform_3, window_bounds = array<i64: 8, 128>}]} {
    %c0 = arith.constant 0 : index
    %c0_0 = arith.constant 0 : index
    %0 = vector.load %arg1[%c0, %c0_0] : memref<8x128xf32, #tpu.memory_space<vmem>>, vector<8x128xf32>
    %c0_1 = arith.constant 0 : index
    %c0_2 = arith.constant 0 : index
    %1 = vector.load %arg2[%c0_1, %c0_2] : memref<128x128xf32, #tpu.memory_space<vmem>>, vector<128x128xf32>
    %cst = arith.constant dense<0.000000e+00> : vector<8x128xf32>
    %2 = tpu.matmul %0, %1, %cst {dimension_numbers = #tpu.dot_dimension_numbers<[1], [0], [0], [1], [0, 0, 1, 1], [], []>} : vector<8x128xf32>, vector<128x128xf32>, vector<8x128xf32> -> vector<8x128xf32>
    %c0_3 = arith.constant 0 : index
    %c0_4 = arith.constant 0 : index
    %3 = vector.load %arg3[%c0_3, %c0_4] : memref<8x128xf32, #tpu.memory_space<vmem>>, vector<1x128xf32>
    %4 = vector.broadcast %3 : vector<1x128xf32> to vector<8x128xf32>
    %5 = arith.addf %2, %4 : vector<8x128xf32>
    %cst_5 = arith.constant 0.707106769 : f32
    %6 = vector.broadcast %cst_5 : f32 to vector<8x128xf32>
    %7 = arith.mulf %5, %6 : vector<8x128xf32>
    %8 = math.erf %7 : vector<8x128xf32>
    %cst_6 = arith.constant 5.000000e-01 : f32
    %9 = vector.broadcast %cst_6 : f32 to vector<8x128xf32>
    %10 = arith.mulf %9, %8 : vector<8x128xf32>
    %cst_7 = arith.constant 5.000000e-01 : f32
    %11 = vector.broadcast %cst_7 : f32 to vector<8x128xf32>
    %12 = arith.addf %11, %10 : vector<8x128xf32>
    %13 = arith.mulf %5, %12 : vector<8x128xf32>
    %cst_8 = arith.constant dense<0.000000e+00> : vector<8xf32>
    %14 = vector.multi_reduction <add>, %13, %cst_8 [1] : vector<8x128xf32> to vector<8xf32>
    %15 = vector.shape_cast %14 : vector<8xf32> to vector<8x1xf32>
    %cst_9 = arith.constant 3.125000e-02 : f32
    %16 = vector.broadcast %cst_9 : f32 to vector<8x1xf32>
    %17 = arith.mulf %15, %16 : vector<8x1xf32>
    %18 = vector.broadcast %17 : vector<8x1xf32> to vector<8x128xf32>
    %19 = arith.subf %13, %18 : vector<8x128xf32>
    %20 = arith.mulf %19, %19 : vector<8x128xf32>
    %cst_10 = arith.constant dense<0.000000e+00> : vector<8xf32>
    %21 = vector.multi_reduction <add>, %20, %cst_10 [1] : vector<8x128xf32> to vector<8xf32>
    %22 = vector.shape_cast %21 : vector<8xf32> to vector<8x1xf32>
    %23 = arith.mulf %17, %17 : vector<8x1xf32>
    %cst_11 = arith.constant 9.600000e+01 : f32
    %24 = vector.broadcast %cst_11 : f32 to vector<8x1xf32>
    %25 = arith.mulf %24, %23 : vector<8x1xf32>
    %26 = arith.subf %22, %25 : vector<8x1xf32>
    %cst_12 = arith.constant 3.125000e-02 : f32
    %27 = vector.broadcast %cst_12 : f32 to vector<8x1xf32>
    %28 = arith.mulf %26, %27 : vector<8x1xf32>
    %cst_13 = arith.constant 0.000000e+00 : f32
    %29 = vector.broadcast %cst_13 : f32 to vector<8x1xf32>
    %30 = arith.maximumf %28, %29 : vector<8x1xf32>
    %cst_14 = arith.constant 9.99999996E-13 : f32
    %31 = vector.broadcast %cst_14 : f32 to vector<8x1xf32>
    %32 = arith.addf %30, %31 : vector<8x1xf32>
    %33 = math.rsqrt %32 : vector<8x1xf32>
    %34 = vector.broadcast %33 : vector<8x1xf32> to vector<8x128xf32>
    %35 = arith.mulf %19, %34 : vector<8x128xf32>
    %c1 = arith.constant 1 : index
    %c0_15 = arith.constant 0 : index
    %36 = vector.load %arg3[%c1, %c0_15] : memref<8x128xf32, #tpu.memory_space<vmem>>, vector<1x128xf32>
    %37 = vector.broadcast %36 : vector<1x128xf32> to vector<8x128xf32>
    %38 = arith.mulf %35, %37 : vector<8x128xf32>
    %c2 = arith.constant 2 : index
    %c0_16 = arith.constant 0 : index
    %39 = vector.load %arg3[%c2, %c0_16] : memref<8x128xf32, #tpu.memory_space<vmem>>, vector<1x128xf32>
    %40 = vector.broadcast %39 : vector<1x128xf32> to vector<8x128xf32>
    %41 = arith.addf %38, %40 : vector<8x128xf32>
    %c0_17 = arith.constant 0 : index
    %c0_18 = arith.constant 0 : index
    %42 = vector.load %arg4[%c0_17, %c0_18] : memref<8x128xf32, #tpu.memory_space<vmem>>, vector<8x128xf32>
    tpu.vector_store %arg4[%c0_17, %c0_18], %41 {strides = array<i32>} : memref<8x128xf32, #tpu.memory_space<vmem>>, vector<8x128xf32>,
    return
  }
  func.func @transform_0(%arg0: i32) -> (i32, i32) {
    %c0_i32 = arith.constant 0 : i32
    %c0_i32_0 = arith.constant 0 : i32
    return %arg0, %c0_i32 : i32, i32
  }
  func.func @transform_1(%arg0: i32) -> (i32, i32) {
    %c0_i32 = arith.constant 0 : i32
    %c0_i32_0 = arith.constant 0 : i32
    %c0_i32_1 = arith.constant 0 : i32
    return %c0_i32, %c0_i32_0 : i32, i32
  }
  func.func @transform_2(%arg0: i32) -> (i32, i32) {
    %c0_i32 = arith.constant 0 : i32
    %c0_i32_0 = arith.constant 0 : i32
    %c0_i32_1 = arith.constant 0 : i32
    return %c0_i32, %c0_i32_0 : i32, i32
  }
  func.func @transform_3(%arg0: i32) -> (i32, i32) {
    %c0_i32 = arith.constant 0 : i32
    %c0_i32_0 = arith.constant 0 : i32
    return %arg0, %c0_i32 : i32, i32
  }
}

module attributes {stable_mosaic.version = 11 : i64} {
  func.func @kernel(%arg0: i32, %arg1: memref<8x128xf32, #tpu.memory_space<vmem>>, %arg2: memref<128x128xf32, #tpu.memory_space<vmem>>, %arg3: memref<8x128xf32, #tpu.memory_space<vmem>>, %arg4: memref<8x128xf32, #tpu.memory_space<vmem>>) attributes {dimension_semantics = [#tpu.dimension_semantics<parallel>], iteration_bounds = array<i64: 2>, scalar_prefetch = 0 : i64, scratch_operands = 0 : i64, tpu.core_type = #tpu.core_type<tc>, window_params = [{transform_indices = @transform_0, window_bounds = array<i64: 8, 128>}, {pipeline_mode = #tpu.pipeline_mode<synchronous>, transform_indices = @transform_1, window_bounds = array<i64: 128, 128>}, {pipeline_mode = #tpu.pipeline_mode<synchronous>, transform_indices = @transform_2, window_bounds = array<i64: 8, 128>}, {transform_indices = @transform_3, window_bounds = array<i64: 8, 128>}]} {
    %c0 = arith.constant 0 : index
    %c0_0 = arith.constant 0 : index
    %0 = vector.load %arg1[%c0, %c0_0] : memref<8x128xf32, #tpu.memory_space<vmem>>, vector<8x128xf32>
    %c0_1 = arith.constant 0 : index
    %c0_2 = arith.constant 0 : index
    %1 = vector.load %arg2[%c0_1, %c0_2] : memref<128x128xf32, #tpu.memory_space<vmem>>, vector<128x128xf32>
    %cst = arith.constant dense<0.000000e+00> : vector<8x128xf32>
    %2 = tpu.matmul %0, %1, %cst {dimension_numbers = #tpu.dot_dimension_numbers<[1], [0], [0], [1], [0, 0, 1, 1], [], []>} : vector<8x128xf32>, vector<128x128xf32>, vector<8x128xf32> -> vector<8x128xf32>
    %c0_3 = arith.constant 0 : index
    %c0_4 = arith.constant 0 : index
    %3 = vector.load %arg3[%c0_3, %c0_4] : memref<8x128xf32, #tpu.memory_space<vmem>>, vector<1x128xf32>
    %4 = vector.broadcast %3 : vector<1x128xf32> to vector<8x128xf32>
    %5 = arith.addf %2, %4 : vector<8x128xf32>
    %cst_5 = arith.constant 0.707106769 : f32
    %6 = vector.broadcast %cst_5 : f32 to vector<8x128xf32>
    %7 = arith.mulf %5, %6 : vector<8x128xf32>
    %8 = math.erf %7 : vector<8x128xf32>
    %cst_6 = arith.constant 5.000000e-01 : f32
    %9 = vector.broadcast %cst_6 : f32 to vector<8x128xf32>
    %10 = arith.mulf %9, %8 : vector<8x128xf32>
    %cst_7 = arith.constant 5.000000e-01 : f32
    %11 = vector.broadcast %cst_7 : f32 to vector<8x128xf32>
    %12 = arith.addf %11, %10 : vector<8x128xf32>
    %13 = arith.mulf %5, %12 : vector<8x128xf32>
    %cst_8 = arith.constant dense<0.000000e+00> : vector<8xf32>
    %14 = vector.multi_reduction <add>, %13, %cst_8 [1] : vector<8x128xf32> to vector<8xf32>
    %15 = vector.shape_cast %14 : vector<8xf32> to vector<8x1xf32>
    %cst_9 = arith.constant 3.125000e-02 : f32
    %16 = vector.broadcast %cst_9 : f32 to vector<8x1xf32>
    %17 = arith.mulf %15, %16 : vector<8x1xf32>
    %18 = vector.broadcast %17 : vector<8x1xf32> to vector<8x128xf32>
    %19 = arith.subf %13, %18 : vector<8x128xf32>
    %20 = arith.mulf %19, %19 : vector<8x128xf32>
    %cst_10 = arith.constant dense<0.000000e+00> : vector<8xf32>
    %21 = vector.multi_reduction <add>, %20, %cst_10 [1] : vector<8x128xf32> to vector<8xf32>
    %22 = vector.shape_cast %21 : vector<8xf32> to vector<8x1xf32>
    %23 = arith.mulf %17, %17 : vector<8x1xf32>
    %cst_11 = arith.constant 9.600000e+01 : f32
    %24 = vector.broadcast %cst_11 : f32 to vector<8x1xf32>
    %25 = arith.mulf %24, %23 : vector<8x1xf32>
    %26 = arith.subf %22, %25 : vector<8x1xf32>
    %cst_12 = arith.constant 3.125000e-02 : f32
    %27 = vector.broadcast %cst_12 : f32 to vector<8x1xf32>
    %28 = arith.mulf %26, %27 : vector<8x1xf32>
    %cst_13 = arith.constant 0.000000e+00 : f32
    %29 = vector.broadcast %cst_13 : f32 to vector<8x1xf32>
    %30 = arith.maximumf %28, %29 : vector<8x1xf32>
    %cst_14 = arith.constant 9.99999996E-13 : f32
    %31 = vector.broadcast %cst_14 : f32 to vector<8x1xf32>
    %32 = arith.addf %30, %31 : vector<8x1xf32>
    %33 = math.rsqrt %32 : vector<8x1xf32>
    %34 = vector.broadcast %33 : vector<8x1xf32> to vector<8x128xf32>
    %35 = arith.mulf %19, %34 : vector<8x128xf32>
    %c1 = arith.constant 1 : index
    %c0_15 = arith.constant 0 : index
    %36 = vector.load %arg3[%c1, %c0_15] : memref<8x128xf32, #tpu.memory_space<vmem>>, vector<1x128xf32>
    %37 = vector.broadcast %36 : vector<1x128xf32> to vector<8x128xf32>
    %38 = arith.mulf %35, %37 : vector<8x128xf32>
    %c2 = arith.constant 2 : index
    %c0_16 = arith.constant 0 : index
    %39 = vector.load %arg3[%c2, %c0_16] : memref<8x128xf32, #tpu.memory_space<vmem>>, vector<1x128xf32>
    %40 = vector.broadcast %39 : vector<1x128xf32> to vector<8x128xf32>
    %41 = arith.addf %38, %40 : vector<8x128xf32>
    %c0_17 = arith.constant 0 : index
    %c0_18 = arith.constant 0 : index
    %42 = vector.load %arg4[%c0_17, %c0_18] : memref<8x128xf32, #tpu.memory_space<vmem>>, vector<8x128xf32>
    tpu.vector_store %arg4[%c0_17, %c0_18], %41 {strides = array<i32>} : memref<8x128xf32, #tpu.memory_space<vmem>>, vector<8x128xf32>,
    return
  }
  func.func @transform_0(%arg0: i32) -> (i32, i32) {
    %c0_i32 = arith.constant 0 : i32
    %c0_i32_0 = arith.constant 0 : i32
    return %arg0, %c0_i32 : i32, i32
  }
  func.func @transform_1(%arg0: i32) -> (i32, i32) {
    %c0_i32 = arith.constant 0 : i32
    %c0_i32_0 = arith.constant 0 : i32
    %c0_i32_1 = arith.constant 0 : i32
    return %c0_i32, %c0_i32_0 : i32, i32
  }
  func.func @transform_2(%arg0: i32) -> (i32, i32) {
    %c0_i32 = arith.constant 0 : i32
    %c0_i32_0 = arith.constant 0 : i32
    %c0_i32_1 = arith.constant 0 : i32
    return %c0_i32, %c0_i32_0 : i32, i32
  }
  func.func @transform_3(%arg0: i32) -> (i32, i32) {
    %c0_i32 = arith.constant 0 : i32
    %c0_i32_0 = arith.constant 0 : i32
    return %arg0, %c0_i32 : i32, i32
  }
}

</mosaic_0001>

<llo_original>
// kernel: tpu_custom_call.1
$region0: #{tpu_custom_call.1}
  #allocation0 [shape = 'u32[]', space=smem, size = 0x4, offset = 0x4, fixed_abs, tag = 'smem constant byte address 0x4 - core index']
  #allocation1 [shape = 'u32[144,128]{1,0:T(1,128)}', space=vmem, size = 0x12000, scoped, tag = 'internal scratch']
  %s0 = inlined_call_operand.hbm [shape: f32[16,128], index: 0, kind: input, shape index: {}]
  %s1 = inlined_call_operand.hbm [shape: f32[128,128], index: 1, kind: input, shape index: {}]
  %s2 = inlined_call_operand.hbm [shape: f32[8,128], index: 2, kind: input, shape index: {}]
  %s3 = inlined_call_operand.hbm [shape: f32[16,128], index: 3, kind: output, shape index: {}]
  %s4 = sld [smem:[#allocation0]]
  $region57: #{tpu_custom_call.1} parent=0
    _
  %s6 = ssub.s32 1, %s4
  %s7 = scalar_select 0, %s6, %s4
  $region1: #{tpu_custom_call.1} parent=0
    #allocation2 [shape = 'u8[8192]{0}', space=vmem, size = 0x2000, scoped, tag = 'input window, operand 0']
    #allocation3 [shape = 's32[2]{0}', space=sflag, size = 0x8, scoped, tag = 'scoped memory for tpu_custom_call.1']
    #allocation4 [shape = 's32[2]{0}', space=sflag, size = 0x8, scoped, tag = 'scoped memory for tpu_custom_call.1']
    #allocation5 [shape = 'u8[65536]{0}', space=vmem, size = 0x10000, scoped, tag = 'input window, operand 1, single buffered']
    #allocation6 [shape = 's32[1]{0}', space=sflag, size = 0x4, scoped, tag = 'scoped memory for tpu_custom_call.1']
    #allocation7 [shape = 'u8[4096]{0}', space=vmem, size = 0x1000, scoped, tag = 'input window, operand 2, single buffered']
    #allocation8 [shape = 'u8[8192]{0}', space=vmem, size = 0x2000, scoped, tag = 'output window, operand 0']
    %8 = vsyncpa [#allocation3], 0
    %s9 = scalar_lea.sflag [#allocation3], 1
    %10 = vsyncpa %s9, 0
    %11 = vsyncpa [#allocation6], 0
    %12 = vsyncpa [#allocation4], 0
    %s13 = scalar_lea.sflag [#allocation4], 1
    %14 = vsyncpa %s13, 0
    loop: start=0, step=1, limit=4
    $region2: #{tpu_custom_call.1} parent=1 // loop_pre_header
      _
    $region3: #{tpu_custom_call.1} parent=1 // loop_header
      %s16 = sphi 0, %s20
      %p17 = scmp.ge.s32.totalorder %s16, 4
      %s26 = sphi 0, %s28
      %s29 = sphi 0, %s26
      %s30 = sphi 0, %s29
      %s46 = sphi 0, %s30
      %s50 = sphi 0, %s50
      %s52 = sphi 0, %s50
      %s53 = sphi 0, %s52
      %s67 = sphi 0, %s53
      %s71 = sphi 0, %s71
      %s73 = sphi 0, %s71
      %s74 = sphi 0, %s73
      %s88 = sphi 0, %s74
      %s94 = sphi 0, %s96
      %s97 = sphi 0, %s94
      %s98 = sphi 0, %s97
      %s114 = sphi 0, %s98
    $region4: #{tpu_custom_call.1} parent=1 // loop_header_branch
      %19 = sbr.rel (%p17) target = $region8
    $region5: #{tpu_custom_call.1} parent=1 // loop_body
      %s21 = ssub.s32 %s16, 1
      %s22 = ssub.s32 %s16, 2
      %s23 = sadd.s32 %s16, 1
      %s24 = ssub.s32 %s16, %s23
      %p25 = scmp.eq.s32.totalorder %s24, 0
      %s27 = sadd.s32 %s26, 1
      %s28 = scalar_select %p25, %s26, %s27
      %p31 = pneg %p25
      %p32 = scmp.eq.s32.totalorder %s16, 1
      %p33 = por %p31, %p32
      %p34 = scmp.ne.s32.totalorder %s26, %s29
      %p35 = scmp.eq.s32.totalorder %s16, 0
      %p36 = por %p34, %p35
      %p37 = scmp.ne.s32.totalorder %s26, %s29
      %p38 = scmp.eq.s32.totalorder %s21, 1
      %p39 = por %p37, %p38
      %p40 = scmp.ne.s32.totalorder %s29, %s30
      %p41 = scmp.eq.s32.totalorder %s21, 0
      %p42 = por %p40, %p41
      %p43 = scmp.ne.s32.totalorder %s29, %s30
      %p44 = scmp.eq.s32.totalorder %s22, 1
      %p45 = por %p43, %p44
      %p47 = scmp.ne.s32.totalorder %s30, %s46
      %p48 = scmp.eq.s32.totalorder %s22, 0
      %p49 = por %p47, %p48
      %s51 = sadd.s32 %s50, 1
      %p54 = scmp.eq.s32.totalorder %s16, 1
      %p55 = scmp.ne.s32.totalorder %s50, %s52
      %p56 = scmp.eq.s32.totalorder %s16, 0
      %p57 = por %p55, %p56
      %p58 = scmp.ne.s32.totalorder %s50, %s52
      %p59 = scmp.eq.s32.totalorder %s21, 1
      %p60 = por %p58, %p59
      %p61 = scmp.ne.s32.totalorder %s52, %s53
      %p62 = scmp.eq.s32.totalorder %s21, 0
      %p63 = por %p61, %p62
      %p64 = scmp.ne.s32.totalorder %s52, %s53
      %p65 = scmp.eq.s32.totalorder %s22, 1
      %p66 = por %p64, %p65
      %p68 = scmp.ne.s32.totalorder %s53, %s67
      %p69 = scmp.eq.s32.totalorder %s22, 0
      %p70 = por %p68, %p69
      %s72 = sadd.s32 %s71, 1
      %p75 = scmp.eq.s32.totalorder %s16, 1
      %p76 = scmp.ne.s32.totalorder %s71, %s73
      %p77 = scmp.eq.s32.totalorder %s16, 0
      %p78 = por %p76, %p77
      %p79 = scmp.ne.s32.totalorder %s71, %s73
      %p80 = scmp.eq.s32.totalorder %s21, 1
      %p81 = por %p79, %p80
      %p82 = scmp.ne.s32.totalorder %s73, %s74
      %p83 = scmp.eq.s32.totalorder %s21, 0
      %p84 = por %p82, %p83
      %p85 = scmp.ne.s32.totalorder %s73, %s74
      %p86 = scmp.eq.s32.totalorder %s22, 1
      %p87 = por %p85, %p86
      %p89 = scmp.ne.s32.totalorder %s74, %s88
      %p90 = scmp.eq.s32.totalorder %s22, 0
      %p91 = por %p89, %p90
      %s92 = ssub.s32 %s16, %s23
      %p93 = scmp.eq.s32.totalorder %s92, 0
      %s95 = sadd.s32 %s94, 1
      %s96 = scalar_select %p93, %s94, %s95
      %p99 = pneg %p93
      %p100 = scmp.eq.s32.totalorder %s16, 1
      %p101 = por %p99, %p100
      %p102 = scmp.ne.s32.totalorder %s94, %s97
      %p103 = scmp.eq.s32.totalorder %s16, 0
      %p104 = por %p102, %p103
      %p105 = scmp.ne.s32.totalorder %s94, %s97
      %p106 = scmp.eq.s32.totalorder %s21, 1
      %p107 = por %p105, %p106
      %p108 = scmp.ne.s32.totalorder %s97, %s98
      %p109 = scmp.eq.s32.totalorder %s21, 0
      %p110 = por %p108, %p109
      %p111 = scmp.ne.s32.totalorder %s97, %s98
      %p112 = scmp.eq.s32.totalorder %s22, 1
      %p113 = por %p111, %p112
      %p115 = scmp.ne.s32.totalorder %s98, %s114
      %p116 = scmp.eq.s32.totalorder %s22, 0
      %p117 = por %p115, %p116
      %p118 = scmp.le.s32.totalorder 1, %s16
      %p119 = scmp.lt.s32.totalorder %s16, 3
      %p120 = pnand %p118, %p119
      %p121 = pneg %p120
      // Predicated region
      $region9: #{tpu_custom_call.1} parent=5 // pred_check
        _
      $region10: #{tpu_custom_call.1} parent=5 // pred_check_branch
        %123 = sbr.rel (%p120) target = $region12
      $region11: #{tpu_custom_call.1} parent=5 // pred_region
        %s124 = ssub.s32 %s16, 1
        // Predicated region
        $region13: #{tpu_custom_call.1} parent=11 // pred_check
          %p125 = pneg %p63
        $region14: #{tpu_custom_call.1} parent=11 // pred_check_branch
          %127 = sbr.rel (%p125) target = $region16
        $region15: #{tpu_custom_call.1} parent=11 // pred_region
          %s129 = ssub.s32 2048, 2048
          %130 = vsyncadd [#allocation6], %s129
          %s131 = sshll.u32 [#allocation5], 4
          %s132 = int_to_ptr.vmem [resolvable:$true] %s131
          %137 = dma.hbm_to_vmem [thread:$0]  %s1, 2048, %s132, [#allocation6], 128, 128, 8
        $region16: #{tpu_custom_call.1} parent=11 // pred_fallthru
          _
        // Predicated region
        $region17: #{tpu_custom_call.1} parent=11 // pred_check
          %p138 = pneg %p84
        $region18: #{tpu_custom_call.1} parent=11 // pred_check_branch
          %140 = sbr.rel (%p138) target = $region20
        $region19: #{tpu_custom_call.1} parent=11 // pred_region
          %s142 = ssub.s32 128, 128
          %143 = vsyncadd [#allocation6], %s142
          %s145 = sshll.u32 [#allocation7], 4
          %s146 = int_to_ptr.vmem [resolvable:$true] %s145
          %148 = dma.hbm_to_vmem [thread:$0]  %s2, 128, %s146, [#allocation6]
        $region20: #{tpu_custom_call.1} parent=11 // pred_fallthru
          _
      $region12: #{tpu_custom_call.1} parent=5 // pred_fallthru
        _
      %p149 = scmp.lt.s32.totalorder %s16, 2
      // Predicated region
      $region21: #{tpu_custom_call.1} parent=5 // pred_check
        %p150 = pneg %p149
      $region22: #{tpu_custom_call.1} parent=5 // pred_check_branch
        %152 = sbr.rel (%p150) target = $region24
      $region23: #{tpu_custom_call.1} parent=5 // pred_region
        // Predicated region
        $region25: #{tpu_custom_call.1} parent=23 // pred_check
          %p153 = pneg %p36
        $region26: #{tpu_custom_call.1} parent=23 // pred_check_branch
          %155 = sbr.rel (%p153) target = $region28
        $region27: #{tpu_custom_call.1} parent=23 // pred_region
          %s156 = sand.u32 %s26, 1
          %s157 = scalar_lea.sflag [#allocation3], %s156
          %s158 = sand.u32 %s26, 1
          %s159 = smul.addr %s158, 8
          %s160 = scalar_lea.vmem [#allocation2], %s159
          %s162 = ssub.s32 128, 128
          %163 = vsyncadd %s157, %s162
          %s164 = smul.addr %s16, 128
          %s165 = scalar_lea.hbm %s0, %s164
          %s167 = sshll.u32 %s160, 4
          %s168 = int_to_ptr.vmem [resolvable:$true] %s167
          %170 = dma.hbm_to_vmem [thread:$0]  %s165, 128, %s168, %s157
        $region28: #{tpu_custom_call.1} parent=23 // pred_fallthru
          _
      $region24: #{tpu_custom_call.1} parent=5 // pred_fallthru
        _
      %p171 = scmp.le.s32.totalorder 1, %s16
      %p172 = scmp.lt.s32.totalorder %s16, 3
      %p173 = pnand %p171, %p172
      %p174 = pneg %p173
      // Predicated region
      $region29: #{tpu_custom_call.1} parent=5 // pred_check
        _
      $region30: #{tpu_custom_call.1} parent=5 // pred_check_branch
        %176 = sbr.rel (%p173) target = $region32
      $region31: #{tpu_custom_call.1} parent=5 // pred_region
        %s177 = ssub.s32 %s16, 1
        %s178 = sand.u32 %s29, 1
        %s179 = scalar_lea.sflag [#allocation3], %s178
        %s180 = sand.u32 %s29, 1
        %s181 = smul.addr %s180, 8
        %s182 = scalar_lea.vmem [#allocation2], %s181
        // Predicated region
        $region33: #{tpu_custom_call.1} parent=31 // pred_check
          %p183 = pneg %p42
        $region34: #{tpu_custom_call.1} parent=31 // pred_check_branch
          %185 = sbr.rel (%p183) target = $region36
        $region35: #{tpu_custom_call.1} parent=31 // pred_region
          %186 = dma.done %s179, 128
        $region36: #{tpu_custom_call.1} parent=31 // pred_fallthru
          _
        // Predicated region
        $region37: #{tpu_custom_call.1} parent=31 // pred_check
          %p187 = pneg %p63
        $region38: #{tpu_custom_call.1} parent=31 // pred_check_branch
          %189 = sbr.rel (%p187) target = $region40
        $region39: #{tpu_custom_call.1} parent=31 // pred_region
          %190 = dma.done [#allocation6], 2048
        $region40: #{tpu_custom_call.1} parent=31 // pred_fallthru
          _
        // Predicated region
        $region41: #{tpu_custom_call.1} parent=31 // pred_check
          %p191 = pneg %p84
        $region42: #{tpu_custom_call.1} parent=31 // pred_check_branch
          %193 = sbr.rel (%p191) target = $region44
        $region43: #{tpu_custom_call.1} parent=31 // pred_region
          %194 = dma.done [#allocation6], 128
        $region44: #{tpu_custom_call.1} parent=31 // pred_fallthru
          _
        %s195 = sand.u32 %s29, 1
        %s196 = scalar_lea.sflag [#allocation3], %s195
        %s197 = sand.u32 %s29, 1
        %s198 = smul.addr %s197, 8
        %s199 = scalar_lea.vmem [#allocation2], %s198
        %p200 = pneg %p42
        %p201 = pneg %p39
        %p202 = pneg %p63
        %p203 = pneg %p60
        %p204 = pneg %p84
        %p205 = pneg %p81
        %p206 = pneg %p110
        %p207 = pneg %p107
        %s208 = sand.u32 %s97, 1
        %s209 = scalar_lea.sflag [#allocation4], %s208
        %s210 = sand.u32 %s97, 1
        %s211 = smul.addr %s210, 8
        %s212 = scalar_lea.vmem [#allocation8], %s211
        %v213 = vld [vmem:[%s182] sm:$0xff]
        %v214 = vld [vmem:[#allocation5] sm:$0xff]
        %v215 = vld [vmem:[#allocation5 + $0x8] sm:$0xff]
        %v216 = vld [vmem:[#allocation5 + $0x10] sm:$0xff]
        %v217 = vld [vmem:[#allocation5 + $0x18] sm:$0xff]
        %v218 = vld [vmem:[#allocation5 + $0x20] sm:$0xff]
        %v219 = vld [vmem:[#allocation5 + $0x28] sm:$0xff]
        %v220 = vld [vmem:[#allocation5 + $0x30] sm:$0xff]
        %v221 = vld [vmem:[#allocation5 + $0x38] sm:$0xff]
        %v222 = vld [vmem:[#allocation5 + $0x40] sm:$0xff]
        %v223 = vld [vmem:[#allocation5 + $0x48] sm:$0xff]
        %v224 = vld [vmem:[#allocation5 + $0x50] sm:$0xff]
        %v225 = vld [vmem:[#allocation5 + $0x58] sm:$0xff]
        %v226 = vld [vmem:[#allocation5 + $0x60] sm:$0xff]
        %v227 = vld [vmem:[#allocation5 + $0x68] sm:$0xff]
        %v228 = vld [vmem:[#allocation5 + $0x70] sm:$0xff]
        %v229 = vld [vmem:[#allocation5 + $0x78] sm:$0xff]
        %v230 = vld [vmem:[#allocation7] sm:$0x1]
        %v231 = vlaneseq
        %v232 = vshrl.u32 %v231, 7
        %v233 = vsub.s32 0, %v232
        %v234 = vrot.slane %v230, %v233
        %235 = vmatprep.subr.mxu0 0.0
        %236 = vmatpush1.msra.mxu0 %v229
        %237 = vmatprep.subr.mxu0 0.0
        %238 = vmatpush1.msra.mxu0 %v228
        %239 = vmatprep.subr.mxu0 0.0
        %240 = vmatpush1.msra.mxu0 %v227
        %241 = vmatprep.subr.mxu0 0.0
        %242 = vmatpush1.msra.mxu0 %v226
        %243 = vmatprep.subr.mxu0 0.0
        %244 = vmatpush1.msra.mxu0 %v225
        %245 = vmatprep.subr.mxu0 0.0
        %246 = vmatpush1.msra.mxu0 %v224
        %247 = vmatprep.subr.mxu0 0.0
        %248 = vmatpush1.msra.mxu0 %v223
        %249 = vmatprep.subr.mxu0 0.0
        %250 = vmatpush1.msra.mxu0 %v222
        %251 = vmatprep.subr.mxu0 0.0
        %252 = vmatpush1.msra.mxu0 %v221
        %253 = vmatprep.subr.mxu0 0.0
        %254 = vmatpush1.msra.mxu0 %v220
        %255 = vmatprep.subr.mxu0 0.0
        %256 = vmatpush1.msra.mxu0 %v219
        %257 = vmatprep.subr.mxu0 0.0
        %258 = vmatpush1.msra.mxu0 %v218
        %259 = vmatprep.subr.mxu0 0.0
        %260 = vmatpush1.msra.mxu0 %v217
        %261 = vmatprep.subr.mxu0 0.0
        %262 = vmatpush1.msra.mxu0 %v216
        %263 = vmatprep.subr.mxu0 0.0
        %264 = vmatpush1.msra.mxu0 %v215
        %265 = vmatprep.subr.mxu0 0.0
        %266 = vmatpush1.msra.mxu0 %v214
        %267 = vmatprep.subr.mxu0 0.0
        %268 = vmatpush2.msra.mxu0 0.0
        %269 = vmatprep.subr.mxu0 0.0
        %270 = vmatpush2.msra.mxu0 0.0
        %271 = vmatprep.subr.mxu0 0.0
        %272 = vmatpush2.msra.mxu0 0.0
        %273 = vmatprep.subr.mxu0 0.0
        %274 = vmatpush2.msra.mxu0 0.0
        %275 = vmatprep.subr.mxu0 0.0
        %276 = vmatpush2.msra.mxu0 0.0
        %277 = vmatprep.subr.mxu0 0.0
        %278 = vmatpush2.msra.mxu0 0.0
        %279 = vmatprep.subr.mxu0 0.0
        %280 = vmatpush2.msra.mxu0 0.0
        %281 = vmatprep.subr.mxu0 0.0
        %282 = vmatpush2.msra.mxu0 0.0
        %283 = vmatprep.subr.mxu0 0.0
        %284 = vmatpush2.msra.mxu0 0.0
        %285 = vmatprep.subr.mxu0 0.0
        %286 = vmatpush2.msra.mxu0 0.0
        %287 = vmatprep.subr.mxu0 0.0
        %288 = vmatpush2.msra.mxu0 0.0
        %289 = vmatprep.subr.mxu0 0.0
        %290 = vmatpush2.msra.mxu0 0.0
        %291 = vmatprep.subr.mxu0 0.0
        %292 = vmatpush2.msra.mxu0 0.0
        %293 = vmatprep.subr.mxu0 0.0
        %294 = vmatpush2.msra.mxu0 0.0
        %295 = vmatprep.subr.mxu0 0.0
        %296 = vmatpush2.msra.mxu0 0.0
        %297 = vmatprep.subr.mxu0 0.0
        %298 = vmatpush2.msra.mxu0 0.0
        %299 = vmatprep.mubr.f32.mxu0 0.0
        %300 = vmatmul.mubr.f32.gmra.mxu0 %v213
        %v301 = vpop.f32.mrf.mxu0
        %v302 = vadd.f32 %v234, %v301
        %v303 = vpop.f32.mrf.mxu0
        %304 = vdwg.mxu0
        %v305 = vmul.f32 %v302, 0.70710677
        %v306 = verf.f32.pop %v305
        %v307 = vmul.f32 %v306, 0.5
        %v308 = vadd.f32 %v307, 0.5
        %v309 = vmul.f32 %v302, %v308
        %310 = vadd.xlane.f32.xlu0 %v309
        %v311 = vpop.xlane.xlu0 %310
        %v312 = vmul.f32 %v311, 0.03125
        %v313 = vsub.f32 %v309, %v312
        %v314 = vmul.f32 %v313, %v313
        %315 = vadd.xlane.f32.xlu0 %v314
        %v316 = vpop.xlane.xlu0 %315
        %v317 = vmul.f32 %v312, %v312
        %v318 = vmul.f32 %v317, 96.0
        %v319 = vsub.f32 %v316, %v318
        %v320 = vmul.f32 %v319, 0.03125
        %v321 = vmax.f32 %v320, 0.0
        %v322 = vadd.f32 %v321, 1e-12
        %v323 = vrsqrt.pop %v322
        %v324 = vmul.f32 %v313, %v323
        %v325 = vld [vmem:[#allocation7 + $0x1] sm:$0x1]
        %v326 = vlaneseq
        %v327 = vshrl.u32 %v326, 7
        %v328 = vsub.s32 0, %v327
        %v329 = vrot.slane %v325, %v328
        %v330 = vmul.f32 %v324, %v329
        %v331 = vld [vmem:[#allocation7 + $0x2] sm:$0x1]
        %v332 = vlaneseq
        %v333 = vshrl.u32 %v332, 7
        %v334 = vsub.s32 0, %v333
        %v335 = vrot.slane %v331, %v334
        %v336 = vadd.f32 %v330, %v335
        %337 = vst [vmem:[%s212] sm:$0xff] %v336
        %s338 = sand.u32 %s97, 1
        %s339 = scalar_lea.sflag [#allocation4], %s338
        %s340 = sand.u32 %s97, 1
        %s341 = smul.addr %s340, 8
        %s342 = scalar_lea.vmem [#allocation8], %s341
        // Predicated region
        $region45: #{tpu_custom_call.1} parent=31 // pred_check
          %p343 = pneg %p107
        $region46: #{tpu_custom_call.1} parent=31 // pred_check_branch
          %345 = sbr.rel (%p343) target = $region48
        $region47: #{tpu_custom_call.1} parent=31 // pred_region
          %s347 = ssub.s32 128, 128
          %348 = vsyncadd %s339, %s347
          %s349 = smul.addr %s21, 128
          %s350 = scalar_lea.hbm %s3, %s349
          %s352 = sshll.u32 %s342, 4
          %s353 = int_to_ptr.vmem [resolvable:$true] %s352
          %355 = dma.vmem_to_hbm [thread:$0]  %s353, 128, %s350, %s339
        $region48: #{tpu_custom_call.1} parent=31 // pred_fallthru
          _
      $region32: #{tpu_custom_call.1} parent=5 // pred_fallthru
        _
      %p356 = scmp.le.s32.totalorder 2, %s16
      // Predicated region
      $region49: #{tpu_custom_call.1} parent=5 // pred_check
        %p357 = pneg %p356
      $region50: #{tpu_custom_call.1} parent=5 // pred_check_branch
        %359 = sbr.rel (%p357) target = $region52
      $region51: #{tpu_custom_call.1} parent=5 // pred_region
        %s360 = ssub.s32 %s16, 2
        // Predicated region
        $region53: #{tpu_custom_call.1} parent=51 // pred_check
          %p361 = pneg %p113
        $region54: #{tpu_custom_call.1} parent=51 // pred_check_branch
          %363 = sbr.rel (%p361) target = $region56
        $region55: #{tpu_custom_call.1} parent=51 // pred_region
          %s364 = sand.u32 %s98, 1
          %s365 = scalar_lea.sflag [#allocation4], %s364
          %s366 = sand.u32 %s98, 1
          %s367 = smul.addr %s366, 8
          %s368 = scalar_lea.vmem [#allocation8], %s367
          %369 = dma.done %s365, 128
        $region56: #{tpu_custom_call.1} parent=51 // pred_fallthru
          _
      $region52: #{tpu_custom_call.1} parent=5 // pred_fallthru
        _
    $region6: #{tpu_custom_call.1} parent=1 // loop_footer
      %s20 = sadd.s32 1, %s16
    $region7: #{tpu_custom_call.1} parent=1 // loop_footer_branch
      %15 = sbr.rel target = $region3
    $region8: #{tpu_custom_call.1} parent=1 // loop_exit
      _
    %370 = vsyncpa [#allocation3], 1
    %s371 = scalar_lea.sflag [#allocation3], 1
    %372 = vsyncpa %s371, 1
    %373 = vsyncpa [#allocation6], 1
    %374 = vsyncpa [#allocation4], 1
    %s375 = scalar_lea.sflag [#allocation4], 1
    %376 = vsyncpa %s375, 1

// kernel: tpu_custom_call.1
$region0: #{tpu_custom_call.1}
  #allocation0 [shape = 'u32[]', space=smem, size = 0x4, offset = 0x4, fixed_abs, tag = 'smem constant byte address 0x4 - core index']
  #allocation1 [shape = 'u32[144,128]{1,0:T(1,128)}', space=vmem, size = 0x12000, scoped, tag = 'internal scratch']
  %s0 = inlined_call_operand.hbm [shape: f32[16,128], index: 0, kind: input, shape index: {}]
  %s1 = inlined_call_operand.hbm [shape: f32[128,128], index: 1, kind: input, shape index: {}]
  %s2 = inlined_call_operand.hbm [shape: f32[8,128], index: 2, kind: input, shape index: {}]
  %s3 = inlined_call_operand.hbm [shape: f32[16,128], index: 3, kind: output, shape index: {}]
  %s4 = sld [smem:[#allocation0]]
  $region57: #{tpu_custom_call.1} parent=0
    _
  %s6 = ssub.s32 1, %s4
  %s7 = scalar_select 0, %s6, %s4
  $region1: #{tpu_custom_call.1} parent=0
    #allocation2 [shape = 'u8[8192]{0}', space=vmem, size = 0x2000, scoped, tag = 'input window, operand 0']
    #allocation3 [shape = 's32[2]{0}', space=sflag, size = 0x8, scoped, tag = 'scoped memory for tpu_custom_call.1']
    #allocation4 [shape = 's32[2]{0}', space=sflag, size = 0x8, scoped, tag = 'scoped memory for tpu_custom_call.1']
    #allocation5 [shape = 'u8[65536]{0}', space=vmem, size = 0x10000, scoped, tag = 'input window, operand 1, single buffered']
    #allocation6 [shape = 's32[1]{0}', space=sflag, size = 0x4, scoped, tag = 'scoped memory for tpu_custom_call.1']
    #allocation7 [shape = 'u8[4096]{0}', space=vmem, size = 0x1000, scoped, tag = 'input window, operand 2, single buffered']
    #allocation8 [shape = 'u8[8192]{0}', space=vmem, size = 0x2000, scoped, tag = 'output window, operand 0']
    %8 = vsyncpa [#allocation3], 0
    %s9 = scalar_lea.sflag [#allocation3], 1
    %10 = vsyncpa %s9, 0
    %11 = vsyncpa [#allocation6], 0
    %12 = vsyncpa [#allocation4], 0
    %s13 = scalar_lea.sflag [#allocation4], 1
    %14 = vsyncpa %s13, 0
    loop: start=0, step=1, limit=4
    $region2: #{tpu_custom_call.1} parent=1 // loop_pre_header
      _
    $region3: #{tpu_custom_call.1} parent=1 // loop_header
      %s16 = sphi 0, %s20
      %p17 = scmp.ge.s32.totalorder %s16, 4
      %s26 = sphi 0, %s28
      %s29 = sphi 0, %s26
      %s30 = sphi 0, %s29
      %s46 = sphi 0, %s30
      %s50 = sphi 0, %s50
      %s52 = sphi 0, %s50
      %s53 = sphi 0, %s52
      %s67 = sphi 0, %s53
      %s71 = sphi 0, %s71
      %s73 = sphi 0, %s71
      %s74 = sphi 0, %s73
      %s88 = sphi 0, %s74
      %s94 = sphi 0, %s96
      %s97 = sphi 0, %s94
      %s98 = sphi 0, %s97
      %s114 = sphi 0, %s98
    $region4: #{tpu_custom_call.1} parent=1 // loop_header_branch
      %19 = sbr.rel (%p17) target = $region8
    $region5: #{tpu_custom_call.1} parent=1 // loop_body
      %s21 = ssub.s32 %s16, 1
      %s22 = ssub.s32 %s16, 2
      %s23 = sadd.s32 %s16, 1
      %s24 = ssub.s32 %s16, %s23
      %p25 = scmp.eq.s32.totalorder %s24, 0
      %s27 = sadd.s32 %s26, 1
      %s28 = scalar_select %p25, %s26, %s27
      %p31 = pneg %p25
      %p32 = scmp.eq.s32.totalorder %s16, 1
      %p33 = por %p31, %p32
      %p34 = scmp.ne.s32.totalorder %s26, %s29
      %p35 = scmp.eq.s32.totalorder %s16, 0
      %p36 = por %p34, %p35
      %p37 = scmp.ne.s32.totalorder %s26, %s29
      %p38 = scmp.eq.s32.totalorder %s21, 1
      %p39 = por %p37, %p38
      %p40 = scmp.ne.s32.totalorder %s29, %s30
      %p41 = scmp.eq.s32.totalorder %s21, 0
      %p42 = por %p40, %p41
      %p43 = scmp.ne.s32.totalorder %s29, %s30
      %p44 = scmp.eq.s32.totalorder %s22, 1
      %p45 = por %p43, %p44
      %p47 = scmp.ne.s32.totalorder %s30, %s46
      %p48 = scmp.eq.s32.totalorder %s22, 0
      %p49 = por %p47, %p48
      %s51 = sadd.s32 %s50, 1
      %p54 = scmp.eq.s32.totalorder %s16, 1
      %p55 = scmp.ne.s32.totalorder %s50, %s52
      %p56 = scmp.eq.s32.totalorder %s16, 0
      %p57 = por %p55, %p56
      %p58 = scmp.ne.s32.totalorder %s50, %s52
      %p59 = scmp.eq.s32.totalorder %s21, 1
      %p60 = por %p58, %p59
      %p61 = scmp.ne.s32.totalorder %s52, %s53
      %p62 = scmp.eq.s32.totalorder %s21, 0
      %p63 = por %p61, %p62
      %p64 = scmp.ne.s32.totalorder %s52, %s53
      %p65 = scmp.eq.s32.totalorder %s22, 1
      %p66 = por %p64, %p65
      %p68 = scmp.ne.s32.totalorder %s53, %s67
      %p69 = scmp.eq.s32.totalorder %s22, 0
      %p70 = por %p68, %p69
      %s72 = sadd.s32 %s71, 1
      %p75 = scmp.eq.s32.totalorder %s16, 1
      %p76 = scmp.ne.s32.totalorder %s71, %s73
      %p77 = scmp.eq.s32.totalorder %s16, 0
      %p78 = por %p76, %p77
      %p79 = scmp.ne.s32.totalorder %s71, %s73
      %p80 = scmp.eq.s32.totalorder %s21, 1
      %p81 = por %p79, %p80
      %p82 = scmp.ne.s32.totalorder %s73, %s74
      %p83 = scmp.eq.s32.totalorder %s21, 0
      %p84 = por %p82, %p83
      %p85 = scmp.ne.s32.totalorder %s73, %s74
      %p86 = scmp.eq.s32.totalorder %s22, 1
      %p87 = por %p85, %p86
      %p89 = scmp.ne.s32.totalorder %s74, %s88
      %p90 = scmp.eq.s32.totalorder %s22, 0
      %p91 = por %p89, %p90
      %s92 = ssub.s32 %s16, %s23
      %p93 = scmp.eq.s32.totalorder %s92, 0
      %s95 = sadd.s32 %s94, 1
      %s96 = scalar_select %p93, %s94, %s95
      %p99 = pneg %p93
      %p100 = scmp.eq.s32.totalorder %s16, 1
      %p101 = por %p99, %p100
      %p102 = scmp.ne.s32.totalorder %s94, %s97
      %p103 = scmp.eq.s32.totalorder %s16, 0
      %p104 = por %p102, %p103
      %p105 = scmp.ne.s32.totalorder %s94, %s97
      %p106 = scmp.eq.s32.totalorder %s21, 1
      %p107 = por %p105, %p106
      %p108 = scmp.ne.s32.totalorder %s97, %s98
      %p109 = scmp.eq.s32.totalorder %s21, 0
      %p110 = por %p108, %p109
      %p111 = scmp.ne.s32.totalorder %s97, %s98
      %p112 = scmp.eq.s32.totalorder %s22, 1
      %p113 = por %p111, %p112
      %p115 = scmp.ne.s32.totalorder %s98, %s114
      %p116 = scmp.eq.s32.totalorder %s22, 0
      %p117 = por %p115, %p116
      %p118 = scmp.le.s32.totalorder 1, %s16
      %p119 = scmp.lt.s32.totalorder %s16, 3
      %p120 = pnand %p118, %p119
      %p121 = pneg %p120
      // Predicated region
      $region9: #{tpu_custom_call.1} parent=5 // pred_check
        _
      $region10: #{tpu_custom_call.1} parent=5 // pred_check_branch
        %123 = sbr.rel (%p120) target = $region12
      $region11: #{tpu_custom_call.1} parent=5 // pred_region
        %s124 = ssub.s32 %s16, 1
        // Predicated region
        $region13: #{tpu_custom_call.1} parent=11 // pred_check
          %p125 = pneg %p63
        $region14: #{tpu_custom_call.1} parent=11 // pred_check_branch
          %127 = sbr.rel (%p125) target = $region16
        $region15: #{tpu_custom_call.1} parent=11 // pred_region
          %s129 = ssub.s32 2048, 2048
          %130 = vsyncadd [#allocation6], %s129
          %s131 = sshll.u32 [#allocation5], 4
          %s132 = int_to_ptr.vmem [resolvable:$true] %s131
          %137 = dma.hbm_to_vmem [thread:$0]  %s1, 2048, %s132, [#allocation6], 128, 128, 8
        $region16: #{tpu_custom_call.1} parent=11 // pred_fallthru
          _
        // Predicated region
        $region17: #{tpu_custom_call.1} parent=11 // pred_check
          %p138 = pneg %p84
        $region18: #{tpu_custom_call.1} parent=11 // pred_check_branch
          %140 = sbr.rel (%p138) target = $region20
        $region19: #{tpu_custom_call.1} parent=11 // pred_region
          %s142 = ssub.s32 128, 128
          %143 = vsyncadd [#allocation6], %s142
          %s145 = sshll.u32 [#allocation7], 4
          %s146 = int_to_ptr.vmem [resolvable:$true] %s145
          %148 = dma.hbm_to_vmem [thread:$0]  %s2, 128, %s146, [#allocation6]
        $region20: #{tpu_custom_call.1} parent=11 // pred_fallthru
          _
      $region12: #{tpu_custom_call.1} parent=5 // pred_fallthru
        _
      %p149 = scmp.lt.s32.totalorder %s16, 2
      // Predicated region
      $region21: #{tpu_custom_call.1} parent=5 // pred_check
        %p150 = pneg %p149
      $region22: #{tpu_custom_call.1} parent=5 // pred_check_branch
        %152 = sbr.rel (%p150) target = $region24
      $region23: #{tpu_custom_call.1} parent=5 // pred_region
        // Predicated region
        $region25: #{tpu_custom_call.1} parent=23 // pred_check
          %p153 = pneg %p36
        $region26: #{tpu_custom_call.1} parent=23 // pred_check_branch
          %155 = sbr.rel (%p153) target = $region28
        $region27: #{tpu_custom_call.1} parent=23 // pred_region
          %s156 = sand.u32 %s26, 1
          %s157 = scalar_lea.sflag [#allocation3], %s156
          %s158 = sand.u32 %s26, 1
          %s159 = smul.addr %s158, 8
          %s160 = scalar_lea.vmem [#allocation2], %s159
          %s162 = ssub.s32 128, 128
          %163 = vsyncadd %s157, %s162
          %s164 = smul.addr %s16, 128
          %s165 = scalar_lea.hbm %s0, %s164
          %s167 = sshll.u32 %s160, 4
          %s168 = int_to_ptr.vmem [resolvable:$true] %s167
          %170 = dma.hbm_to_vmem [thread:$0]  %s165, 128, %s168, %s157
        $region28: #{tpu_custom_call.1} parent=23 // pred_fallthru
          _
      $region24: #{tpu_custom_call.1} parent=5 // pred_fallthru
        _
      %p171 = scmp.le.s32.totalorder 1, %s16
      %p172 = scmp.lt.s32.totalorder %s16, 3
      %p173 = pnand %p171, %p172
      %p174 = pneg %p173
      // Predicated region
      $region29: #{tpu_custom_call.1} parent=5 // pred_check
        _
      $region30: #{tpu_custom_call.1} parent=5 // pred_check_branch
        %176 = sbr.rel (%p173) target = $region32
      $region31: #{tpu_custom_call.1} parent=5 // pred_region
        %s177 = ssub.s32 %s16, 1
        %s178 = sand.u32 %s29, 1
        %s179 = scalar_lea.sflag [#allocation3], %s178
        %s180 = sand.u32 %s29, 1
        %s181 = smul.addr %s180, 8
        %s182 = scalar_lea.vmem [#allocation2], %s181
        // Predicated region
        $region33: #{tpu_custom_call.1} parent=31 // pred_check
          %p183 = pneg %p42
        $region34: #{tpu_custom_call.1} parent=31 // pred_check_branch
          %185 = sbr.rel (%p183) target = $region36
        $region35: #{tpu_custom_call.1} parent=31 // pred_region
          %186 = dma.done %s179, 128
        $region36: #{tpu_custom_call.1} parent=31 // pred_fallthru
          _
        // Predicated region
        $region37: #{tpu_custom_call.1} parent=31 // pred_check
          %p187 = pneg %p63
        $region38: #{tpu_custom_call.1} parent=31 // pred_check_branch
          %189 = sbr.rel (%p187) target = $region40
        $region39: #{tpu_custom_call.1} parent=31 // pred_region
          %190 = dma.done [#allocation6], 2048
        $region40: #{tpu_custom_call.1} parent=31 // pred_fallthru
          _
        // Predicated region
        $region41: #{tpu_custom_call.1} parent=31 // pred_check
          %p191 = pneg %p84
        $region42: #{tpu_custom_call.1} parent=31 // pred_check_branch
          %193 = sbr.rel (%p191) target = $region44
        $region43: #{tpu_custom_call.1} parent=31 // pred_region
          %194 = dma.done [#allocation6], 128
        $region44: #{tpu_custom_call.1} parent=31 // pred_fallthru
          _
        %s195 = sand.u32 %s29, 1
        %s196 = scalar_lea.sflag [#allocation3], %s195
        %s197 = sand.u32 %s29, 1
        %s198 = smul.addr %s197, 8
        %s199 = scalar_lea.vmem [#allocation2], %s198
        %p200 = pneg %p42
        %p201 = pneg %p39
        %p202 = pneg %p63
        %p203 = pneg %p60
        %p204 = pneg %p84
        %p205 = pneg %p81
        %p206 = pneg %p110
        %p207 = pneg %p107
        %s208 = sand.u32 %s97, 1
        %s209 = scalar_lea.sflag [#allocation4], %s208
        %s210 = sand.u32 %s97, 1
        %s211 = smul.addr %s210, 8
        %s212 = scalar_lea.vmem [#allocation8], %s211
        %v213 = vld [vmem:[%s182] sm:$0xff]
        %v214 = vld [vmem:[#allocation5] sm:$0xff]
        %v215 = vld [vmem:[#allocation5 + $0x8] sm:$0xff]
        %v216 = vld [vmem:[#allocation5 + $0x10] sm:$0xff]
        %v217 = vld [vmem:[#allocation5 + $0x18] sm:$0xff]
        %v218 = vld [vmem:[#allocation5 + $0x20] sm:$0xff]
        %v219 = vld [vmem:[#allocation5 + $0x28] sm:$0xff]
        %v220 = vld [vmem:[#allocation5 + $0x30] sm:$0xff]
        %v221 = vld [vmem:[#allocation5 + $0x38] sm:$0xff]
        %v222 = vld [vmem:[#allocation5 + $0x40] sm:$0xff]
        %v223 = vld [vmem:[#allocation5 + $0x48] sm:$0xff]
        %v224 = vld [vmem:[#allocation5 + $0x50] sm:$0xff]
        %v225 = vld [vmem:[#allocation5 + $0x58] sm:$0xff]
        %v226 = vld [vmem:[#allocation5 + $0x60] sm:$0xff]
        %v227 = vld [vmem:[#allocation5 + $0x68] sm:$0xff]
        %v228 = vld [vmem:[#allocation5 + $0x70] sm:$0xff]
        %v229 = vld [vmem:[#allocation5 + $0x78] sm:$0xff]
        %v230 = vld [vmem:[#allocation7] sm:$0x1]
        %v231 = vlaneseq
        %v232 = vshrl.u32 %v231, 7
        %v233 = vsub.s32 0, %v232
        %v234 = vrot.slane %v230, %v233
        %235 = vmatprep.subr.mxu0 0.0
        %236 = vmatpush1.msra.mxu0 %v229
        %237 = vmatprep.subr.mxu0 0.0
        %238 = vmatpush1.msra.mxu0 %v228
        %239 = vmatprep.subr.mxu0 0.0
        %240 = vmatpush1.msra.mxu0 %v227
        %241 = vmatprep.subr.mxu0 0.0
        %242 = vmatpush1.msra.mxu0 %v226
        %243 = vmatprep.subr.mxu0 0.0
        %244 = vmatpush1.msra.mxu0 %v225
        %245 = vmatprep.subr.mxu0 0.0
        %246 = vmatpush1.msra.mxu0 %v224
        %247 = vmatprep.subr.mxu0 0.0
        %248 = vmatpush1.msra.mxu0 %v223
        %249 = vmatprep.subr.mxu0 0.0
        %250 = vmatpush1.msra.mxu0 %v222
        %251 = vmatprep.subr.mxu0 0.0
        %252 = vmatpush1.msra.mxu0 %v221
        %253 = vmatprep.subr.mxu0 0.0
        %254 = vmatpush1.msra.mxu0 %v220
        %255 = vmatprep.subr.mxu0 0.0
        %256 = vmatpush1.msra.mxu0 %v219
        %257 = vmatprep.subr.mxu0 0.0
        %258 = vmatpush1.msra.mxu0 %v218
        %259 = vmatprep.subr.mxu0 0.0
        %260 = vmatpush1.msra.mxu0 %v217
        %261 = vmatprep.subr.mxu0 0.0
        %262 = vmatpush1.msra.mxu0 %v216
        %263 = vmatprep.subr.mxu0 0.0
        %264 = vmatpush1.msra.mxu0 %v215
        %265 = vmatprep.subr.mxu0 0.0
        %266 = vmatpush1.msra.mxu0 %v214
        %267 = vmatprep.subr.mxu0 0.0
        %268 = vmatpush2.msra.mxu0 0.0
        %269 = vmatprep.subr.mxu0 0.0
        %270 = vmatpush2.msra.mxu0 0.0
        %271 = vmatprep.subr.mxu0 0.0
        %272 = vmatpush2.msra.mxu0 0.0
        %273 = vmatprep.subr.mxu0 0.0
        %274 = vmatpush2.msra.mxu0 0.0
        %275 = vmatprep.subr.mxu0 0.0
        %276 = vmatpush2.msra.mxu0 0.0
        %277 = vmatprep.subr.mxu0 0.0
        %278 = vmatpush2.msra.mxu0 0.0
        %279 = vmatprep.subr.mxu0 0.0
        %280 = vmatpush2.msra.mxu0 0.0
        %281 = vmatprep.subr.mxu0 0.0
        %282 = vmatpush2.msra.mxu0 0.0
        %283 = vmatprep.subr.mxu0 0.0
        %284 = vmatpush2.msra.mxu0 0.0
        %285 = vmatprep.subr.mxu0 0.0
        %286 = vmatpush2.msra.mxu0 0.0
        %287 = vmatprep.subr.mxu0 0.0
        %288 = vmatpush2.msra.mxu0 0.0
        %289 = vmatprep.subr.mxu0 0.0
        %290 = vmatpush2.msra.mxu0 0.0
        %291 = vmatprep.subr.mxu0 0.0
        %292 = vmatpush2.msra.mxu0 0.0
        %293 = vmatprep.subr.mxu0 0.0
        %294 = vmatpush2.msra.mxu0 0.0
        %295 = vmatprep.subr.mxu0 0.0
        %296 = vmatpush2.msra.mxu0 0.0
        %297 = vmatprep.subr.mxu0 0.0
        %298 = vmatpush2.msra.mxu0 0.0
        %299 = vmatprep.mubr.f32.mxu0 0.0
        %300 = vmatmul.mubr.f32.gmra.mxu0 %v213
        %v301 = vpop.f32.mrf.mxu0
        %v302 = vadd.f32 %v234, %v301
        %v303 = vpop.f32.mrf.mxu0
        %304 = vdwg.mxu0
        %v305 = vmul.f32 %v302, 0.70710677
        %v306 = verf.f32.pop %v305
        %v307 = vmul.f32 %v306, 0.5
        %v308 = vadd.f32 %v307, 0.5
        %v309 = vmul.f32 %v302, %v308
        %310 = vadd.xlane.f32.xlu0 %v309
        %v311 = vpop.xlane.xlu0 %310
        %v312 = vmul.f32 %v311, 0.03125
        %v313 = vsub.f32 %v309, %v312
        %v314 = vmul.f32 %v313, %v313
        %315 = vadd.xlane.f32.xlu0 %v314
        %v316 = vpop.xlane.xlu0 %315
        %v317 = vmul.f32 %v312, %v312
        %v318 = vmul.f32 %v317, 96.0
        %v319 = vsub.f32 %v316, %v318
        %v320 = vmul.f32 %v319, 0.03125
        %v321 = vmax.f32 %v320, 0.0
        %v322 = vadd.f32 %v321, 1e-12
        %v323 = vrsqrt.pop %v322
        %v324 = vmul.f32 %v313, %v323
        %v325 = vld [vmem:[#allocation7 + $0x1] sm:$0x1]
        %v326 = vlaneseq
        %v327 = vshrl.u32 %v326, 7
        %v328 = vsub.s32 0, %v327
        %v329 = vrot.slane %v325, %v328
        %v330 = vmul.f32 %v324, %v329
        %v331 = vld [vmem:[#allocation7 + $0x2] sm:$0x1]
        %v332 = vlaneseq
        %v333 = vshrl.u32 %v332, 7
        %v334 = vsub.s32 0, %v333
        %v335 = vrot.slane %v331, %v334
        %v336 = vadd.f32 %v330, %v335
        %337 = vst [vmem:[%s212] sm:$0xff] %v336
        %s338 = sand.u32 %s97, 1
        %s339 = scalar_lea.sflag [#allocation4], %s338
        %s340 = sand.u32 %s97, 1
        %s341 = smul.addr %s340, 8
        %s342 = scalar_lea.vmem [#allocation8], %s341
        // Predicated region
        $region45: #{tpu_custom_call.1} parent=31 // pred_check
          %p343 = pneg %p107
        $region46: #{tpu_custom_call.1} parent=31 // pred_check_branch
          %345 = sbr.rel (%p343) target = $region48
        $region47: #{tpu_custom_call.1} parent=31 // pred_region
          %s347 = ssub.s32 128, 128
          %348 = vsyncadd %s339, %s347
          %s349 = smul.addr %s21, 128
          %s350 = scalar_lea.hbm %s3, %s349
          %s352 = sshll.u32 %s342, 4
          %s353 = int_to_ptr.vmem [resolvable:$true] %s352
          %355 = dma.vmem_to_hbm [thread:$0]  %s353, 128, %s350, %s339
        $region48: #{tpu_custom_call.1} parent=31 // pred_fallthru
          _
      $region32: #{tpu_custom_call.1} parent=5 // pred_fallthru
        _
      %p356 = scmp.le.s32.totalorder 2, %s16
      // Predicated region
      $region49: #{tpu_custom_call.1} parent=5 // pred_check
        %p357 = pneg %p356
      $region50: #{tpu_custom_call.1} parent=5 // pred_check_branch
        %359 = sbr.rel (%p357) target = $region52
      $region51: #{tpu_custom_call.1} parent=5 // pred_region
        %s360 = ssub.s32 %s16, 2
        // Predicated region
        $region53: #{tpu_custom_call.1} parent=51 // pred_check
          %p361 = pneg %p113
        $region54: #{tpu_custom_call.1} parent=51 // pred_check_branch
          %363 = sbr.rel (%p361) target = $region56
        $region55: #{tpu_custom_call.1} parent=51 // pred_region
          %s364 = sand.u32 %s98, 1
          %s365 = scalar_lea.sflag [#allocation4], %s364
          %s366 = sand.u32 %s98, 1
          %s367 = smul.addr %s366, 8
          %s368 = scalar_lea.vmem [#allocation8], %s367
          %369 = dma.done %s365, 128
        $region56: #{tpu_custom_call.1} parent=51 // pred_fallthru
          _
      $region52: #{tpu_custom_call.1} parent=5 // pred_fallthru
        _
    $region6: #{tpu_custom_call.1} parent=1 // loop_footer
      %s20 = sadd.s32 1, %s16
    $region7: #{tpu_custom_call.1} parent=1 // loop_footer_branch
      %15 = sbr.rel target = $region3
    $region8: #{tpu_custom_call.1} parent=1 // loop_exit
      _
    %370 = vsyncpa [#allocation3], 1
    %s371 = scalar_lea.sflag [#allocation3], 1
    %372 = vsyncpa %s371, 1
    %373 = vsyncpa [#allocation6], 1
    %374 = vsyncpa [#allocation4], 1
    %s375 = scalar_lea.sflag [#allocation4], 1
    %376 = vsyncpa %s375, 1

</llo_original>
